<compile_context>
chip_gen: v7x
topology: tpu7x:2x2x1
jax: 0.10.0
libtpu: 0.0.40
codegen_flags: <defaults>
</compile_context>

<pallas_src>
import jax
import jax.numpy as jnp
from jax.experimental import pallas as pl
from jax.experimental.pallas import tpu as pltpu

LANE = 128
SUB = 8


def _round_up(x, m):
    return ((x + m - 1) // m) * m


def _make_focal_kernel(rows, tr, needs_mask):
    groups = tr // SUB

    def kernel(pred_ref, gt_ref, term_ref, cnt_ref):
        p = pl.program_id(0)          # parallel axis (TensorCore split)
        r = pl.program_id(1)          # reduction axis (streamed row tiles)

        @pl.when(r == 0)
        def _init():
            term_ref[...] = jnp.zeros_like(term_ref)
            cnt_ref[...] = jnp.zeros_like(cnt_ref)

        pred = pred_ref[...].astype(jnp.float32)
        gt = gt_ref[...].astype(jnp.float32)

        if needs_mask:
            # Logical (unclamped) row-block id this step is responsible for.
            b = 2 * r + p
            rows_left = rows - b * tr                     # scalar int32
            row_ids = jax.lax.broadcasted_iota(jnp.int32, (tr, LANE), 0)
            valid = row_ids < rows_left
            # Sanitize the INPUTS (not just the terms): OOB rows of a partial
            # or duplicate block hold garbage that could be NaN/Inf.
            pred = jnp.where(valid, pred, 0.5)            # keeps log() finite
            gt = jnp.where(valid, gt, 2.0)                # neither pos nor neg

        pos = gt == 1.0
        neg = gt < 1.0

        omp = 1.0 - pred
        # One EUP log per element: pos and neg branches are disjoint.
        L = jnp.log(jnp.where(pos, pred, omp))
        g = 1.0 - gt
        g2 = g * g
        w = jnp.where(pos, omp * omp,
                      jnp.where(neg, (pred * pred) * (g2 * g2), 0.0))
        term = L * w
        cnt = jnp.where(pos, 1.0, 0.0)

        # Sublane-tiled partial reduction only (plain VPU vreg adds); the
        # single cross-lane/XLU reduction happens once, in the wrapper.
        term_ref[0] += term.reshape(groups, SUB, LANE).sum(axis=0)
        cnt_ref[0] += cnt.reshape(groups, SUB, LANE).sum(axis=0)

    return kernel


def focal_loss(pred, gt, *, tile_rows=4096):
    """FocalLoss.forward(out, target) — arbitrary (identical) shapes, f32/bf16."""
    assert pred.shape == gt.shape
    total = int(pred.size)
    assert total > 0

    pred_f = pred.reshape(-1)
    gt_f = gt.reshape(-1)
    # Only pad when the element count is not lane-aligned (<=127 elements; no
    # full-array HBM copy in the common case). Sentinels contribute exactly 0.
    if total % LANE != 0:
        pad = LANE - total % LANE
        pred_f = jnp.pad(pred_f, (0, pad), constant_values=0.5)
        gt_f = jnp.pad(gt_f, (0, pad), constant_values=2.0)
    rows = (total + LANE - 1) // LANE

    tr = min(_round_up(tile_rows, SUB), _round_up(rows, SUB))
    num_blocks = -(-rows // tr)
    n_r = -(-num_blocks // 2)          # 2-way split across TensorCores (v7x)
    needs_mask = (rows % tr != 0) or (2 * n_r != num_blocks)
    last_block = num_blocks - 1

    pred2 = pred_f.reshape(rows, LANE)
    gt2 = gt_f.reshape(rows, LANE)

    def in_map(p, r):
        # Interleaved row-block assignment; clamp keeps the DMA in bounds for
        # the duplicate block when num_blocks is odd (its contribution is
        # masked to zero in the kernel).
        return (jnp.minimum(2 * r + p, last_block), 0)

    def out_map(p, r):
        return (p, 0, 0)

    term_part, cnt_part = pl.pallas_call(
        _make_focal_kernel(rows, tr, needs_mask),
        out_shape=(
            jax.ShapeDtypeStruct((2, SUB, LANE), jnp.float32),
            jax.ShapeDtypeStruct((2, SUB, LANE), jnp.float32),
        ),
        grid_spec=pltpu.PrefetchScalarGridSpec(
            num_scalar_prefetch=0,
            grid=(2, n_r),
            in_specs=[
                pl.BlockSpec((tr, LANE), in_map),
                pl.BlockSpec((tr, LANE), in_map),
            ],
            out_specs=[
                pl.BlockSpec((1, SUB, LANE), out_map),
                pl.BlockSpec((1, SUB, LANE), out_map),
            ],
        ),
        compiler_params=pltpu.CompilerParams(
            dimension_semantics=("parallel", "arbitrary"),
            vmem_limit_bytes=32 * 1024 * 1024),
    )(pred2, gt2)

    # Tiny final reduction (2x8x128 partials) + branch-free reference
    # conditional: if num_pos == 0 the pos contribution is exactly 0, so
    # dividing by 1 reproduces the `-neg_loss` branch.
    term_sum = jnp.sum(term_part)
    num_pos = jnp.sum(cnt_part)
    denom = jnp.where(num_pos == 0.0, 1.0, num_pos)
    return -term_sum / denom


def _reference_jax(pred, gt):
    # Pure-JAX mirror of the PyTorch `_neg_loss`, for checking.
    pos_inds = (gt == 1.0).astype(jnp.float32)
    neg_inds = (gt < 1.0).astype(jnp.float32)
    neg_weights = jnp.power(1.0 - gt, 4)
    pos_loss = jnp.log(pred) * jnp.power(1.0 - pred, 2) * pos_inds
    neg_loss = jnp.log(1.0 - pred) * jnp.power(pred, 2) * neg_weights * neg_inds
    num_pos = pos_inds.sum()
    pos_loss = pos_loss.sum()
    neg_loss = neg_loss.sum()
    return jnp.where(num_pos == 0.0, -neg_loss, -(pos_loss + neg_loss) / num_pos)


if __name__ == "__main__":
    B, C, H, W = 2, 4, 16, 16
    key = jax.random.PRNGKey(0)
    k1, k2, k3 = jax.random.split(key, 3)

    # pred in (0, 1) (post-sigmoid heatmap), gt in [0, 1] with some exact 1s.
    pred = jax.nn.sigmoid(jax.random.normal(k1, (B, C, H, W), dtype=jnp.float32))
    gt_base = jax.random.uniform(k2, (B, C, H, W), dtype=jnp.float32, maxval=0.999)
    peaks = jax.random.uniform(k3, (B, C, H, W)) > 0.95
    gt = jnp.where(peaks, 1.0, gt_base)

    loss = focal_loss(pred, gt)
    jax.block_until_ready(loss)

    ref = _reference_jax(pred, gt)
    assert jnp.allclose(loss, ref, rtol=1e-5, atol=1e-4), (loss, ref)
    print("KERNEL_OK")
</pallas_src>

<mosaic_0001>
module attributes {stable_mosaic.version = 11 : i64} {
  func.func @kernel(%arg0: i32, %arg1: i32, %arg2: memref<16x128xf32, #tpu.memory_space<vmem>>, %arg3: memref<16x128xf32, #tpu.memory_space<vmem>>, %arg4: memref<1x8x128xf32, #tpu.memory_space<vmem>>, %arg5: memref<1x8x128xf32, #tpu.memory_space<vmem>>) attributes {dimension_semantics = [#tpu.dimension_semantics<parallel>, #tpu.dimension_semantics<arbitrary>], iteration_bounds = array<i64: 2, 1>, scalar_prefetch = 0 : i64, scratch_operands = 0 : i64, tpu.core_type = #tpu.core_type<tc>, window_params = [{transform_indices = @transform_0, window_bounds = array<i64: 16, 128>}, {transform_indices = @transform_1, window_bounds = array<i64: 16, 128>}, {transform_indices = @transform_2, window_bounds = array<i64: 1, 8, 128>}, {transform_indices = @transform_3, window_bounds = array<i64: 1, 8, 128>}]} {
    %c0_i32 = arith.constant 0 : i32
    %0 = arith.cmpi eq, %arg1, %c0_i32 : i32
    %1 = arith.extui %0 : i1 to i32
    %c0_i32_0 = arith.constant 0 : i32
    %2 = arith.cmpi ne, %1, %c0_i32_0 : i32
    scf.if %2 {
      %cst_27 = arith.constant 0.000000e+00 : f32
      %54 = vector.broadcast %cst_27 : f32 to vector<1x8x128xf32>
      %c0_28 = arith.constant 0 : index
      %c0_29 = arith.constant 0 : index
      %c0_30 = arith.constant 0 : index
      %55 = vector.load %arg4[%c0_28, %c0_29, %c0_30] : memref<1x8x128xf32, #tpu.memory_space<vmem>>, vector<1x8x128xf32>
      tpu.vector_store %arg4[%c0_28, %c0_29, %c0_30], %54 {strides = array<i32>} : memref<1x8x128xf32, #tpu.memory_space<vmem>>, vector<1x8x128xf32>,
      %cst_31 = arith.constant 0.000000e+00 : f32
      %56 = vector.broadcast %cst_31 : f32 to vector<1x8x128xf32>
      %c0_32 = arith.constant 0 : index
      %c0_33 = arith.constant 0 : index
      %c0_34 = arith.constant 0 : index
      %57 = vector.load %arg5[%c0_32, %c0_33, %c0_34] : memref<1x8x128xf32, #tpu.memory_space<vmem>>, vector<1x8x128xf32>
      tpu.vector_store %arg5[%c0_32, %c0_33, %c0_34], %56 {strides = array<i32>} : memref<1x8x128xf32, #tpu.memory_space<vmem>>, vector<1x8x128xf32>,
    } else {
    }
    %c0 = arith.constant 0 : index
    %c0_1 = arith.constant 0 : index
    %3 = vector.load %arg2[%c0, %c0_1] : memref<16x128xf32, #tpu.memory_space<vmem>>, vector<16x128xf32>
    %c0_2 = arith.constant 0 : index
    %c0_3 = arith.constant 0 : index
    %4 = vector.load %arg3[%c0_2, %c0_3] : memref<16x128xf32, #tpu.memory_space<vmem>>, vector<16x128xf32>
    %c2_i32 = arith.constant 2 : i32
    %5 = arith.muli %c2_i32, %arg1 : i32
    %6 = arith.addi %5, %arg0 : i32
    %c16_i32 = arith.constant 16 : i32
    %7 = arith.muli %6, %c16_i32 : i32
    %c16_i32_4 = arith.constant 16 : i32
    %8 = arith.subi %c16_i32_4, %7 : i32
    %9 = tpu.iota {dimensions = array<i32: 0>} : vector<16x128xi32>
    %10 = vector.broadcast %8 : i32 to vector<16x128xi32>
    %11 = arith.cmpi slt, %9, %10 : vector<16x128xi32>
    %cst = arith.constant 5.000000e-01 : f32
    %12 = vector.broadcast %cst : f32 to vector<16x128xf32>
    %13 = arith.select %11, %3, %12 : vector<16x128xi1>, vector<16x128xf32>
    %cst_5 = arith.constant 2.000000e+00 : f32
    %14 = vector.broadcast %cst_5 : f32 to vector<16x128xf32>
    %15 = arith.select %11, %4, %14 : vector<16x128xi1>, vector<16x128xf32>
    %cst_6 = arith.constant 1.000000e+00 : f32
    %16 = vector.broadcast %cst_6 : f32 to vector<16x128xf32>
    %17 = arith.cmpf oeq, %15, %16 : vector<16x128xf32>
    %cst_7 = arith.constant 1.000000e+00 : f32
    %18 = vector.broadcast %cst_7 : f32 to vector<16x128xf32>
    %19 = arith.cmpf olt, %15, %18 : vector<16x128xf32>
    %cst_8 = arith.constant 1.000000e+00 : f32
    %20 = vector.broadcast %cst_8 : f32 to vector<16x128xf32>
    %21 = arith.subf %20, %13 : vector<16x128xf32>
    %22 = arith.select %17, %13, %21 : vector<16x128xi1>, vector<16x128xf32>
    %23 = math.log %22 : vector<16x128xf32>
    %cst_9 = arith.constant 1.000000e+00 : f32
    %24 = vector.broadcast %cst_9 : f32 to vector<16x128xf32>
    %25 = arith.subf %24, %15 : vector<16x128xf32>
    %26 = arith.mulf %25, %25 : vector<16x128xf32>
    %27 = arith.mulf %21, %21 : vector<16x128xf32>
    %28 = arith.mulf %13, %13 : vector<16x128xf32>
    %29 = arith.mulf %26, %26 : vector<16x128xf32>
    %30 = arith.mulf %28, %29 : vector<16x128xf32>
    %cst_10 = arith.constant 0.000000e+00 : f32
    %31 = vector.broadcast %cst_10 : f32 to vector<16x128xf32>
    %32 = arith.select %19, %30, %31 : vector<16x128xi1>, vector<16x128xf32>
    %33 = arith.select %17, %27, %32 : vector<16x128xi1>, vector<16x128xf32>
    %34 = arith.mulf %23, %33 : vector<16x128xf32>
    %cst_11 = arith.constant 1.000000e+00 : f32
    %cst_12 = arith.constant 0.000000e+00 : f32
    %35 = vector.broadcast %cst_11 : f32 to vector<16x128xf32>
    %36 = vector.broadcast %cst_12 : f32 to vector<16x128xf32>
    %37 = arith.select %17, %35, %36 : vector<16x128xi1>, vector<16x128xf32>
    %c0_13 = arith.constant 0 : index
    %c0_14 = arith.constant 0 : index
    %c0_15 = arith.constant 0 : index
    %38 = vector.load %arg4[%c0_13, %c0_14, %c0_15] : memref<1x8x128xf32, #tpu.memory_space<vmem>>, vector<1x8x128xf32>
    %39 = vector.shape_cast %38 : vector<1x8x128xf32> to vector<8x128xf32>
    %40 = vector.shape_cast %34 : vector<16x128xf32> to vector<2x8x128xf32>
    %cst_16 = arith.constant dense<0.000000e+00> : vector<8x128xf32>
    %41 = vector.multi_reduction <add>, %40, %cst_16 [0] : vector<2x8x128xf32> to vector<8x128xf32>
    %42 = arith.addf %39, %41 : vector<8x128xf32>
    %c0_17 = arith.constant 0 : index
    %c0_18 = arith.constant 0 : index
    %c0_19 = arith.constant 0 : index
    %43 = vector.load %arg4[%c0_17, %c0_18, %c0_19] : memref<1x8x128xf32, #tpu.memory_space<vmem>>, vector<1x8x128xf32>
    %44 = vector.shape_cast %43 : vector<1x8x128xf32> to vector<8x128xf32>
    %45 = vector.shape_cast %42 : vector<8x128xf32> to vector<1x8x128xf32>
    tpu.vector_store %arg4[%c0_17, %c0_18, %c0_19], %45 {strides = array<i32>} : memref<1x8x128xf32, #tpu.memory_space<vmem>>, vector<1x8x128xf32>,
    %c0_20 = arith.constant 0 : index
    %c0_21 = arith.constant 0 : index
    %c0_22 = arith.constant 0 : index
    %46 = vector.load %arg5[%c0_20, %c0_21, %c0_22] : memref<1x8x128xf32, #tpu.memory_space<vmem>>, vector<1x8x128xf32>
    %47 = vector.shape_cast %46 : vector<1x8x128xf32> to vector<8x128xf32>
    %48 = vector.shape_cast %37 : vector<16x128xf32> to vector<2x8x128xf32>
    %cst_23 = arith.constant dense<0.000000e+00> : vector<8x128xf32>
    %49 = vector.multi_reduction <add>, %48, %cst_23 [0] : vector<2x8x128xf32> to vector<8x128xf32>
    %50 = arith.addf %47, %49 : vector<8x128xf32>
    %c0_24 = arith.constant 0 : index
    %c0_25 = arith.constant 0 : index
    %c0_26 = arith.constant 0 : index
    %51 = vector.load %arg5[%c0_24, %c0_25, %c0_26] : memref<1x8x128xf32, #tpu.memory_space<vmem>>, vector<1x8x128xf32>
    %52 = vector.shape_cast %51 : vector<1x8x128xf32> to vector<8x128xf32>
    %53 = vector.shape_cast %50 : vector<8x128xf32> to vector<1x8x128xf32>
    tpu.vector_store %arg5[%c0_24, %c0_25, %c0_26], %53 {strides = array<i32>} : memref<1x8x128xf32, #tpu.memory_space<vmem>>, vector<1x8x128xf32>,
    return
  }
  func.func @transform_0(%arg0: i32, %arg1: i32) -> (i32, i32) {
    %c2_i32 = arith.constant 2 : i32
    %0 = arith.muli %c2_i32, %arg1 : i32
    %1 = arith.addi %0, %arg0 : i32
    %c0_i32 = arith.constant 0 : i32
    %2 = arith.minsi %1, %c0_i32 : i32
    %c0_i32_0 = arith.constant 0 : i32
    %c0_i32_1 = arith.constant 0 : i32
    return %2, %c0_i32_0 : i32, i32
  }
  func.func @transform_1(%arg0: i32, %arg1: i32) -> (i32, i32) {
    %c2_i32 = arith.constant 2 : i32
    %0 = arith.muli %c2_i32, %arg1 : i32
    %1 = arith.addi %0, %arg0 : i32
    %c0_i32 = arith.constant 0 : i32
    %2 = arith.minsi %1, %c0_i32 : i32
    %c0_i32_0 = arith.constant 0 : i32
    %c0_i32_1 = arith.constant 0 : i32
    return %2, %c0_i32_0 : i32, i32
  }
  func.func @transform_2(%arg0: i32, %arg1: i32) -> (i32, i32, i32) {
    %c0_i32 = arith.constant 0 : i32
    %c0_i32_0 = arith.constant 0 : i32
    %c0_i32_1 = arith.constant 0 : i32
    return %arg0, %c0_i32, %c0_i32_0 : i32, i32, i32
  }
  func.func @transform_3(%arg0: i32, %arg1: i32) -> (i32, i32, i32) {
    %c0_i32 = arith.constant 0 : i32
    %c0_i32_0 = arith.constant 0 : i32
    %c0_i32_1 = arith.constant 0 : i32
    return %arg0, %c0_i32, %c0_i32_0 : i32, i32, i32
  }
}

</mosaic_0001>

<llo_original>
// kernel: tpu_custom_call.1
$region0: #{tpu_custom_call.1}
  #allocation0 [shape = 'u32[]', space=smem, size = 0x4, offset = 0x4, fixed_abs, tag = 'smem constant byte address 0x4 - core index']
  #allocation1 [shape = 'u32[144,128]{1,0:T(1,128)}', space=vmem, size = 0x12000, scoped, tag = 'internal scratch']
  %s0 = inlined_call_operand.hbm [shape: f32[16,128], index: 0, kind: input, shape index: {}]
  %s1 = inlined_call_operand.hbm [shape: f32[16,128], index: 1, kind: input, shape index: {}]
  %s2 = inlined_call_operand.hbm [shape: f32[2,8,128], index: 2, kind: output, shape index: {0}]
  %s3 = inlined_call_operand.hbm [shape: f32[2,8,128], index: 3, kind: output, shape index: {1}]
  %4 = xla_tuple %s2, %s3
  %s5 = sld [smem:[#allocation0]]
  $region61: #{tpu_custom_call.1} parent=0
    _
  %s7 = ssub.s32 1, %s5
  %s8 = scalar_select 0, %s7, %s5
  $region1: #{tpu_custom_call.1} parent=0
    #allocation2 [shape = 'u8[16384]{0}', space=vmem, size = 0x4000, scoped, tag = 'input window, operand 0']
    #allocation3 [shape = 's32[2]{0}', space=sflag, size = 0x8, scoped, tag = 'scoped memory for tpu_custom_call.1']
    #allocation4 [shape = 's32[2]{0}', space=sflag, size = 0x8, scoped, tag = 'scoped memory for tpu_custom_call.1']
    #allocation5 [shape = 'u8[16384]{0}', space=vmem, size = 0x4000, scoped, tag = 'input window, operand 1']
    #allocation6 [shape = 's32[2]{0}', space=sflag, size = 0x8, scoped, tag = 'scoped memory for tpu_custom_call.1']
    #allocation7 [shape = 'u8[8192]{0}', space=vmem, size = 0x2000, scoped, tag = 'output window, operand 0']
    #allocation8 [shape = 'u8[8192]{0}', space=vmem, size = 0x2000, scoped, tag = 'output window, operand 1']
    #allocation9 [shape = 's32[2]{0}', space=sflag, size = 0x8, scoped, tag = 'scoped memory for tpu_custom_call.1']
    %9 = vsyncpa [#allocation3], 0
    %s10 = scalar_lea.sflag [#allocation3], 1
    %11 = vsyncpa %s10, 0
    %12 = vsyncpa [#allocation6], 0
    %s13 = scalar_lea.sflag [#allocation6], 1
    %14 = vsyncpa %s13, 0
    %15 = vsyncpa [#allocation4], 0
    %s16 = scalar_lea.sflag [#allocation4], 1
    %17 = vsyncpa %s16, 0
    %18 = vsyncpa [#allocation9], 0
    %s19 = scalar_lea.sflag [#allocation9], 1
    %20 = vsyncpa %s19, 0
    loop: start=0, step=1, limit=4
    $region2: #{tpu_custom_call.1} parent=1 // loop_pre_header
      _
    $region3: #{tpu_custom_call.1} parent=1 // loop_header
      %s22 = sphi 0, %s26
      %p23 = scmp.ge.s32.totalorder %s22, 4
      %s29 = sphi 0, %s41
      %s30 = sphi 0, %s37
      %s31 = sphi 0, %s29
      %s32 = sphi 0, %s30
      %s33 = sphi 0, %s31
      %s34 = sphi 0, %s32
      %s52 = sphi 0, %s54
      %s55 = sphi 0, %s52
      %s56 = sphi 0, %s55
      %s72 = sphi 0, %s56
      %s86 = sphi 0, %s88
      %s89 = sphi 0, %s86
      %s90 = sphi 0, %s89
      %s106 = sphi 0, %s90
      %s112 = sphi 0, %s114
      %s115 = sphi 0, %s112
      %s116 = sphi 0, %s115
      %s132 = sphi 0, %s116
      %s138 = sphi 0, %s140
      %s141 = sphi 0, %s138
      %s142 = sphi 0, %s141
      %s158 = sphi 0, %s142
    $region4: #{tpu_custom_call.1} parent=1 // loop_header_branch
      %25 = sbr.rel (%p23) target = $region8
    $region5: #{tpu_custom_call.1} parent=1 // loop_body
      %s27 = ssub.s32 %s22, 1
      %s28 = ssub.s32 %s22, 2
      %s35 = sadd.s32 1, %s30
      %p36 = scmp.ge.s32.totalorder %s35, 1
      %s37 = scalar_select %p36, 0, %s35
      %s38 = sadd.s32 1, %s29
      %s39 = scalar_select %p36, %s38, %s29
      %p40 = scmp.ge.s32.totalorder %s39, 2
      %s41 = scalar_select %p40, 0, %s39
      %s42 = smul.u32 %s30, 2
      %s43 = sadd.s32 %s42, %s29
      %p44 = scmp.lt.s32.totalorder %s43, 0
      %s45 = scalar_select %p44, %s43, 0
      %s46 = smul.u32 %s37, 2
      %s47 = sadd.s32 %s46, %s41
      %p48 = scmp.lt.s32.totalorder %s47, 0
      %s49 = scalar_select %p48, %s47, 0
      %s50 = ssub.s32 %s45, %s49
      %p51 = scmp.eq.s32.totalorder %s50, 0
      %s53 = sadd.s32 %s52, 1
      %s54 = scalar_select %p51, %s52, %s53
      %p57 = pneg %p51
      %p58 = scmp.eq.s32.totalorder %s22, 1
      %p59 = por %p57, %p58
      %p60 = scmp.ne.s32.totalorder %s52, %s55
      %p61 = scmp.eq.s32.totalorder %s22, 0
      %p62 = por %p60, %p61
      %p63 = scmp.ne.s32.totalorder %s52, %s55
      %p64 = scmp.eq.s32.totalorder %s27, 1
      %p65 = por %p63, %p64
      %p66 = scmp.ne.s32.totalorder %s55, %s56
      %p67 = scmp.eq.s32.totalorder %s27, 0
      %p68 = por %p66, %p67
      %p69 = scmp.ne.s32.totalorder %s55, %s56
      %p70 = scmp.eq.s32.totalorder %s28, 1
      %p71 = por %p69, %p70
      %p73 = scmp.ne.s32.totalorder %s56, %s72
      %p74 = scmp.eq.s32.totalorder %s28, 0
      %p75 = por %p73, %p74
      %s76 = smul.u32 %s30, 2
      %s77 = sadd.s32 %s76, %s29
      %p78 = scmp.lt.s32.totalorder %s77, 0
      %s79 = scalar_select %p78, %s77, 0
      %s80 = smul.u32 %s37, 2
      %s81 = sadd.s32 %s80, %s41
      %p82 = scmp.lt.s32.totalorder %s81, 0
      %s83 = scalar_select %p82, %s81, 0
      %s84 = ssub.s32 %s79, %s83
      %p85 = scmp.eq.s32.totalorder %s84, 0
      %s87 = sadd.s32 %s86, 1
      %s88 = scalar_select %p85, %s86, %s87
      %p91 = pneg %p85
      %p92 = scmp.eq.s32.totalorder %s22, 1
      %p93 = por %p91, %p92
      %p94 = scmp.ne.s32.totalorder %s86, %s89
      %p95 = scmp.eq.s32.totalorder %s22, 0
      %p96 = por %p94, %p95
      %p97 = scmp.ne.s32.totalorder %s86, %s89
      %p98 = scmp.eq.s32.totalorder %s27, 1
      %p99 = por %p97, %p98
      %p100 = scmp.ne.s32.totalorder %s89, %s90
      %p101 = scmp.eq.s32.totalorder %s27, 0
      %p102 = por %p100, %p101
      %p103 = scmp.ne.s32.totalorder %s89, %s90
      %p104 = scmp.eq.s32.totalorder %s28, 1
      %p105 = por %p103, %p104
      %p107 = scmp.ne.s32.totalorder %s90, %s106
      %p108 = scmp.eq.s32.totalorder %s28, 0
      %p109 = por %p107, %p108
      %s110 = ssub.s32 %s29, %s41
      %p111 = scmp.eq.s32.totalorder %s110, 0
      %s113 = sadd.s32 %s112, 1
      %s114 = scalar_select %p111, %s112, %s113
      %p117 = pneg %p111
      %p118 = scmp.eq.s32.totalorder %s22, 1
      %p119 = por %p117, %p118
      %p120 = scmp.ne.s32.totalorder %s112, %s115
      %p121 = scmp.eq.s32.totalorder %s22, 0
      %p122 = por %p120, %p121
      %p123 = scmp.ne.s32.totalorder %s112, %s115
      %p124 = scmp.eq.s32.totalorder %s27, 1
      %p125 = por %p123, %p124
      %p126 = scmp.ne.s32.totalorder %s115, %s116
      %p127 = scmp.eq.s32.totalorder %s27, 0
      %p128 = por %p126, %p127
      %p129 = scmp.ne.s32.totalorder %s115, %s116
      %p130 = scmp.eq.s32.totalorder %s28, 1
      %p131 = por %p129, %p130
      %p133 = scmp.ne.s32.totalorder %s116, %s132
      %p134 = scmp.eq.s32.totalorder %s28, 0
      %p135 = por %p133, %p134
      %s136 = ssub.s32 %s29, %s41
      %p137 = scmp.eq.s32.totalorder %s136, 0
      %s139 = sadd.s32 %s138, 1
      %s140 = scalar_select %p137, %s138, %s139
      %p143 = pneg %p137
      %p144 = scmp.eq.s32.totalorder %s22, 1
      %p145 = por %p143, %p144
      %p146 = scmp.ne.s32.totalorder %s138, %s141
      %p147 = scmp.eq.s32.totalorder %s22, 0
      %p148 = por %p146, %p147
      %p149 = scmp.ne.s32.totalorder %s138, %s141
      %p150 = scmp.eq.s32.totalorder %s27, 1
      %p151 = por %p149, %p150
      %p152 = scmp.ne.s32.totalorder %s141, %s142
      %p153 = scmp.eq.s32.totalorder %s27, 0
      %p154 = por %p152, %p153
      %p155 = scmp.ne.s32.totalorder %s141, %s142
      %p156 = scmp.eq.s32.totalorder %s28, 1
      %p157 = por %p155, %p156
      %p159 = scmp.ne.s32.totalorder %s142, %s158
      %p160 = scmp.eq.s32.totalorder %s28, 0
      %p161 = por %p159, %p160
      %p162 = scmp.le.s32.totalorder 1, %s22
      %p163 = scmp.lt.s32.totalorder %s22, 3
      %p164 = pnand %p162, %p163
      %p165 = pneg %p164
      // Predicated region
      $region9: #{tpu_custom_call.1} parent=5 // pred_check
        _
      $region10: #{tpu_custom_call.1} parent=5 // pred_check_branch
        %167 = sbr.rel (%p164) target = $region12
      $region11: #{tpu_custom_call.1} parent=5 // pred_region
        %s168 = ssub.s32 %s22, 1
      $region12: #{tpu_custom_call.1} parent=5 // pred_fallthru
        _
      %p169 = scmp.lt.s32.totalorder %s22, 2
      // Predicated region
      $region13: #{tpu_custom_call.1} parent=5 // pred_check
        %p170 = pneg %p169
      $region14: #{tpu_custom_call.1} parent=5 // pred_check_branch
        %172 = sbr.rel (%p170) target = $region16
      $region15: #{tpu_custom_call.1} parent=5 // pred_region
        // Predicated region
        $region17: #{tpu_custom_call.1} parent=15 // pred_check
          %p173 = pneg %p62
        $region18: #{tpu_custom_call.1} parent=15 // pred_check_branch
          %175 = sbr.rel (%p173) target = $region20
        $region19: #{tpu_custom_call.1} parent=15 // pred_region
          %s176 = sand.u32 %s52, 1
          %s177 = scalar_lea.sflag [#allocation3], %s176
          %s178 = sand.u32 %s52, 1
          %s179 = smul.addr %s178, 16
          %s180 = scalar_lea.vmem [#allocation2], %s179
          %s181 = smul.u32 %s30, 2
          %s182 = sadd.s32 %s181, %s29
          %p183 = scmp.lt.s32.totalorder %s182, 0
          %s184 = scalar_select %p183, %s182, 0
          %s185 = smul.u32 2, %s184
          %s187 = ssub.s32 256, 256
          %188 = vsyncadd %s177, %s187
          %s189 = smul.addr %s185, 128
          %s190 = scalar_lea.hbm %s0, %s189
          %s191 = sshll.u32 %s180, 4
          %s192 = int_to_ptr.vmem [resolvable:$true] %s191
          %197 = dma.hbm_to_vmem [thread:$0]  %s190, 256, %s192, %s177, 128, 128, 8
        $region20: #{tpu_custom_call.1} parent=15 // pred_fallthru
          _
        // Predicated region
        $region21: #{tpu_custom_call.1} parent=15 // pred_check
          %p198 = pneg %p96
        $region22: #{tpu_custom_call.1} parent=15 // pred_check_branch
          %200 = sbr.rel (%p198) target = $region24
        $region23: #{tpu_custom_call.1} parent=15 // pred_region
          %s201 = sand.u32 %s86, 1
          %s202 = scalar_lea.sflag [#allocation6], %s201
          %s203 = sand.u32 %s86, 1
          %s204 = smul.addr %s203, 16
          %s205 = scalar_lea.vmem [#allocation5], %s204
          %s206 = smul.u32 %s30, 2
          %s207 = sadd.s32 %s206, %s29
          %p208 = scmp.lt.s32.totalorder %s207, 0
          %s209 = scalar_select %p208, %s207, 0
          %s210 = smul.u32 2, %s209
          %s212 = ssub.s32 256, 256
          %213 = vsyncadd %s202, %s212
          %s214 = smul.addr %s210, 128
          %s215 = scalar_lea.hbm %s1, %s214
          %s216 = sshll.u32 %s205, 4
          %s217 = int_to_ptr.vmem [resolvable:$true] %s216
          %222 = dma.hbm_to_vmem [thread:$0]  %s215, 256, %s217, %s202, 128, 128, 8
        $region24: #{tpu_custom_call.1} parent=15 // pred_fallthru
          _
      $region16: #{tpu_custom_call.1} parent=5 // pred_fallthru
        _
      %p223 = scmp.le.s32.totalorder 1, %s22
      %p224 = scmp.lt.s32.totalorder %s22, 3
      %p225 = pnand %p223, %p224
      %p226 = pneg %p225
      // Predicated region
      $region25: #{tpu_custom_call.1} parent=5 // pred_check
        _
      $region26: #{tpu_custom_call.1} parent=5 // pred_check_branch
        %228 = sbr.rel (%p225) target = $region28
      $region27: #{tpu_custom_call.1} parent=5 // pred_region
        %s229 = ssub.s32 %s22, 1
        %s230 = sand.u32 %s55, 1
        %s231 = scalar_lea.sflag [#allocation3], %s230
        %s232 = sand.u32 %s55, 1
        %s233 = smul.addr %s232, 16
        %s234 = scalar_lea.vmem [#allocation2], %s233
        // Predicated region
        $region29: #{tpu_custom_call.1} parent=27 // pred_check
          %p235 = pneg %p68
        $region30: #{tpu_custom_call.1} parent=27 // pred_check_branch
          %237 = sbr.rel (%p235) target = $region32
        $region31: #{tpu_custom_call.1} parent=27 // pred_region
          %238 = dma.done %s231, 256
        $region32: #{tpu_custom_call.1} parent=27 // pred_fallthru
          _
        %s239 = sand.u32 %s89, 1
        %s240 = scalar_lea.sflag [#allocation6], %s239
        %s241 = sand.u32 %s89, 1
        %s242 = smul.addr %s241, 16
        %s243 = scalar_lea.vmem [#allocation5], %s242
        // Predicated region
        $region33: #{tpu_custom_call.1} parent=27 // pred_check
          %p244 = pneg %p102
        $region34: #{tpu_custom_call.1} parent=27 // pred_check_branch
          %246 = sbr.rel (%p244) target = $region36
        $region35: #{tpu_custom_call.1} parent=27 // pred_region
          %247 = dma.done %s240, 256
        $region36: #{tpu_custom_call.1} parent=27 // pred_fallthru
          _
        %s248 = sand.u32 %s55, 1
        %s249 = scalar_lea.sflag [#allocation3], %s248
        %s250 = sand.u32 %s55, 1
        %s251 = smul.addr %s250, 16
        %s252 = scalar_lea.vmem [#allocation2], %s251
        %p253 = pneg %p68
        %p254 = pneg %p65
        %s255 = sand.u32 %s89, 1
        %s256 = scalar_lea.sflag [#allocation6], %s255
        %s257 = sand.u32 %s89, 1
        %s258 = smul.addr %s257, 16
        %s259 = scalar_lea.vmem [#allocation5], %s258
        %p260 = pneg %p102
        %p261 = pneg %p99
        %p262 = pneg %p128
        %p263 = pneg %p125
        %s264 = sand.u32 %s115, 1
        %s265 = scalar_lea.sflag [#allocation4], %s264
        %s266 = sand.u32 %s115, 1
        %s267 = smul.addr %s266, 8
        %s268 = scalar_lea.vmem [#allocation7], %s267
        %p269 = pneg %p154
        %p270 = pneg %p151
        %s271 = sand.u32 %s141, 1
        %s272 = scalar_lea.sflag [#allocation9], %s271
        %s273 = sand.u32 %s141, 1
        %s274 = smul.addr %s273, 8
        %s275 = scalar_lea.vmem [#allocation8], %s274
        %s276 = smul.u32 %s32, 2
        %s277 = sadd.s32 %s276, %s31
        %p278 = scmp.lt.s32.totalorder %s277, 0
        %s279 = scalar_select %p278, %s277, 0
        %s280 = smul.u32 2, %s279
        %s281 = smul.u32 %s32, 2
        %s282 = sadd.s32 %s281, %s31
        %p283 = scmp.lt.s32.totalorder %s282, 0
        %s284 = scalar_select %p283, %s282, 0
        %s285 = smul.u32 2, %s284
        %p286 = scmp.eq.s32.totalorder %s32, 0
        // Predicated region
        $region37: #{tpu_custom_call.1} parent=27 // pred_check
          %p287 = pneg %p286
        $region38: #{tpu_custom_call.1} parent=27 // pred_check_branch
          %289 = sbr.rel (%p287) target = $region40
        $region39: #{tpu_custom_call.1} parent=27 // pred_region
          %290 = vst [vmem:[%s268] sm:$0xff] 0.0
          %291 = vst [vmem:[%s275] sm:$0xff] 0.0
        $region40: #{tpu_custom_call.1} parent=27 // pred_fallthru
          _
        %v292 = vld [vmem:[%s234] sm:$0xff]
        %v293 = vld [vmem:[%s234 + $0x8] sm:$0xff]
        %v294 = vld [vmem:[%s243] sm:$0xff]
        %v295 = vld [vmem:[%s243 + $0x8] sm:$0xff]
        %s296 = smul.u32 %s32, 2
        %s297 = sadd.s32 %s296, %s31
        %s298 = smul.u32 %s297, 16
        %s299 = ssub.s32 16, %s298
        %v300 = vlaneseq
        %v301 = vshrl.u32 %v300, 7
        %v302 = vadd.s32 %v301, 8
        %v303 = vstv %s299
        %vm304 = vcmp.lt.s32.totalorder %v301, %v303
        %vm305 = vcmp.lt.s32.totalorder %v302, %v303
        %v306 = vsel %vm304, %v292, 0.5
        %v307 = vsel %vm305, %v293, 0.5
        %v308 = vsel %vm304, %v294, 2.0
        %v309 = vsel %vm305, %v295, 2.0
        %vm310 = vcmp.eq.f32.partialorder %v308, 1.0
        %vm311 = vcmp.eq.f32.partialorder %v309, 1.0
        %vm312 = vcmp.lt.f32.partialorder %v308, 1.0
        %vm313 = vcmp.lt.f32.partialorder %v309, 1.0
        %v314 = vsub.f32 1.0, %v306
        %v315 = vsub.f32 1.0, %v307
        %v316 = vsel %vm310, %v306, %v314
        %v317 = vsel %vm311, %v307, %v315
        %v318 = vlog2.pop %v316
        %v319 = vmul.f32 %v318, 0.6931472
        %v320 = vlog2.pop %v317
        %v321 = vmul.f32 %v320, 0.6931472
        %v322 = vsub.f32 1.0, %v308
        %v323 = vsub.f32 1.0, %v309
        %v324 = vmul.f32 %v322, %v322
        %v325 = vmul.f32 %v323, %v323
        %v326 = vmul.f32 %v314, %v314
        %v327 = vmul.f32 %v315, %v315
        %v328 = vmul.f32 %v306, %v306
        %v329 = vmul.f32 %v307, %v307
        %v330 = vmul.f32 %v324, %v324
        %v331 = vmul.f32 %v325, %v325
        %v332 = vmul.f32 %v328, %v330
        %v333 = vmul.f32 %v329, %v331
        %v334 = vsel %vm312, %v332, 0.0
        %v335 = vsel %vm313, %v333, 0.0
        %v336 = vsel %vm310, %v326, %v334
        %v337 = vsel %vm311, %v327, %v335
        %v338 = vmul.f32 %v319, %v336
        %v339 = vmul.f32 %v321, %v337
        %v340 = vsel %vm310, 1.0, 0.0
        %v341 = vsel %vm311, 1.0, 0.0
        %v342 = vld [vmem:[%s268] sm:$0xff]
        %v343 = vadd.f32 %v338, %v339
        %v344 = vadd.f32 %v342, %v343
        %345 = vst [vmem:[%s268] sm:$0xff] %v344
        %v346 = vld [vmem:[%s275] sm:$0xff]
        %v347 = vadd.f32 %v340, %v341
        %v348 = vadd.f32 %v346, %v347
        %349 = vst [vmem:[%s275] sm:$0xff] %v348
        %s350 = sand.u32 %s115, 1
        %s351 = scalar_lea.sflag [#allocation4], %s350
        %s352 = sand.u32 %s115, 1
        %s353 = smul.addr %s352, 8
        %s354 = scalar_lea.vmem [#allocation7], %s353
        %s355 = sand.u32 %s141, 1
        %s356 = scalar_lea.sflag [#allocation9], %s355
        %s357 = sand.u32 %s141, 1
        %s358 = smul.addr %s357, 8
        %s359 = scalar_lea.vmem [#allocation8], %s358
        // Predicated region
        $region41: #{tpu_custom_call.1} parent=27 // pred_check
          %p360 = pneg %p125
        $region42: #{tpu_custom_call.1} parent=27 // pred_check_branch
          %362 = sbr.rel (%p360) target = $region44
        $region43: #{tpu_custom_call.1} parent=27 // pred_region
          %s364 = ssub.s32 128, 128
          %365 = vsyncadd %s351, %s364
          %s366 = smul.addr %s31, 128
          %s367 = scalar_lea.hbm %s2, %s366
          %s369 = sshll.u32 %s354, 4
          %s370 = int_to_ptr.vmem [resolvable:$true] %s369
          %372 = dma.vmem_to_hbm [thread:$0]  %s370, 128, %s367, %s351
        $region44: #{tpu_custom_call.1} parent=27 // pred_fallthru
          _
        // Predicated region
        $region45: #{tpu_custom_call.1} parent=27 // pred_check
          %p373 = pneg %p151
        $region46: #{tpu_custom_call.1} parent=27 // pred_check_branch
          %375 = sbr.rel (%p373) target = $region48
        $region47: #{tpu_custom_call.1} parent=27 // pred_region
          %s377 = ssub.s32 128, 128
          %378 = vsyncadd %s356, %s377
          %s379 = smul.addr %s31, 128
          %s380 = scalar_lea.hbm %s3, %s379
          %s382 = sshll.u32 %s359, 4
          %s383 = int_to_ptr.vmem [resolvable:$true] %s382
          %385 = dma.vmem_to_hbm [thread:$0]  %s383, 128, %s380, %s356
        $region48: #{tpu_custom_call.1} parent=27 // pred_fallthru
          _
      $region28: #{tpu_custom_call.1} parent=5 // pred_fallthru
        _
      %p386 = scmp.le.s32.totalorder 2, %s22
      // Predicated region
      $region49: #{tpu_custom_call.1} parent=5 // pred_check
        %p387 = pneg %p386
      $region50: #{tpu_custom_call.1} parent=5 // pred_check_branch
        %389 = sbr.rel (%p387) target = $region52
      $region51: #{tpu_custom_call.1} parent=5 // pred_region
        %s390 = ssub.s32 %s22, 2
        // Predicated region
        $region53: #{tpu_custom_call.1} parent=51 // pred_check
          %p391 = pneg %p131
        $region54: #{tpu_custom_call.1} parent=51 // pred_check_branch
          %393 = sbr.rel (%p391) target = $region56
        $region55: #{tpu_custom_call.1} parent=51 // pred_region
          %s394 = sand.u32 %s116, 1
          %s395 = scalar_lea.sflag [#allocation4], %s394
          %s396 = sand.u32 %s116, 1
          %s397 = smul.addr %s396, 8
          %s398 = scalar_lea.vmem [#allocation7], %s397
          %399 = dma.done %s395, 128
        $region56: #{tpu_custom_call.1} parent=51 // pred_fallthru
          _
        // Predicated region
        $region57: #{tpu_custom_call.1} parent=51 // pred_check
          %p400 = pneg %p157
        $region58: #{tpu_custom_call.1} parent=51 // pred_check_branch
          %402 = sbr.rel (%p400) target = $region60
        $region59: #{tpu_custom_call.1} parent=51 // pred_region
          %s403 = sand.u32 %s142, 1
          %s404 = scalar_lea.sflag [#allocation9], %s403
          %s405 = sand.u32 %s142, 1
          %s406 = smul.addr %s405, 8
          %s407 = scalar_lea.vmem [#allocation8], %s406
          %408 = dma.done %s404, 128
        $region60: #{tpu_custom_call.1} parent=51 // pred_fallthru
          _
      $region52: #{tpu_custom_call.1} parent=5 // pred_fallthru
        _
    $region6: #{tpu_custom_call.1} parent=1 // loop_footer
      %s26 = sadd.s32 1, %s22
    $region7: #{tpu_custom_call.1} parent=1 // loop_footer_branch
      %21 = sbr.rel target = $region3
    $region8: #{tpu_custom_call.1} parent=1 // loop_exit
      _
    %409 = vsyncpa [#allocation3], 1
    %s410 = scalar_lea.sflag [#allocation3], 1
    %411 = vsyncpa %s410, 1
    %412 = vsyncpa [#allocation6], 1
    %s413 = scalar_lea.sflag [#allocation6], 1
    %414 = vsyncpa %s413, 1
    %415 = vsyncpa [#allocation4], 1
    %s416 = scalar_lea.sflag [#allocation4], 1
    %417 = vsyncpa %s416, 1
    %418 = vsyncpa [#allocation9], 1
    %s419 = scalar_lea.sflag [#allocation9], 1
    %420 = vsyncpa %s419, 1

</llo_original>
